<compile_context>
chip_gen: v5e
topology: v5e:2x2
jax: 0.10.0
libtpu: 0.0.40
codegen_flags: <defaults>
</compile_context>

<pallas_src>
import functools

import jax
import jax.numpy as jnp
from jax.experimental import pallas as pl
from jax.experimental.pallas import tpu as pltpu

BN_EPS = 1e-5
LANE = 128
_VMEM_LIMIT = 48 * 1024 * 1024     # explicit scoped-VMEM limit (fits v7x 64 MiB)


# ------------------------------ small helpers -------------------------------

def _round_up(x, m):
    return (x + m - 1) // m * m


def _row_tile(m):
    if m >= 2048:
        return 512
    if m >= 256:
        return 256
    return _round_up(m, 8)


def _pick_tile(total, cap, align=LANE):
    """Largest multiple of `align` that divides `total` and is <= cap."""
    best = align
    t = align
    while t <= min(total, cap):
        if total % t == 0:
            best = t
        t += align
    return best


def _pad_rows(x2d, tile):
    m = x2d.shape[0]
    mp = _round_up(m, tile)
    if mp != m:
        x2d = jnp.pad(x2d, ((0, mp - m), (0, 0)))
    return x2d


def _pad_channels(x, cpad):
    c = x.shape[-1]
    if c == cpad:
        return x
    pad = [(0, 0)] * (x.ndim - 1) + [(0, cpad - c)]
    return jnp.pad(x, pad)


# ----------------------------- Pallas kernels --------------------------------

def _bn_stats_kernel(x_ref, o_ref):
    """Accumulate per-channel [sum ; sum-of-squares] over row tiles."""
    @pl.when(pl.program_id(0) == 0)
    def _():
        o_ref[...] = jnp.zeros_like(o_ref)
    x = x_ref[...]
    o_ref[...] += jnp.concatenate(
        [jnp.sum(x, axis=0, keepdims=True),
         jnp.sum(x * x, axis=0, keepdims=True)], axis=0)


def _bn_relu_kernel(x_ref, scale_ref, shift_ref, o_ref):
    y = jnp.maximum(x_ref[...] * scale_ref[...] + shift_ref[...], 0.0)
    o_ref[...] = y.astype(o_ref.dtype)


def _matmul_kernel(a_ref, b_ref, o_ref, acc_ref):
    """K-tiled matmul with resident f32 accumulator (bf16 MXU operands)."""
    @pl.when(pl.program_id(2) == 0)
    def _():
        acc_ref[...] = jnp.zeros_like(acc_ref)
    acc_ref[...] += jnp.dot(a_ref[...], b_ref[...],
                            preferred_element_type=jnp.float32)

    @pl.when(pl.program_id(2) == pl.num_programs(2) - 1)
    def _():
        o_ref[...] = acc_ref[...].astype(o_ref.dtype)


def _conv3x3_s1_kernel(*args, ho, wo, has_residual):
    """Fused 9-tap 3x3 stride-1 conv; input channels tiled on last grid axis."""
    if has_residual:
        x_ref, w_ref, r_ref, o_ref, acc_ref = args
    else:
        x_ref, w_ref, o_ref, acc_ref = args
        r_ref = None
    k = pl.program_id(2)

    @pl.when(k == 0)
    def _():
        acc_ref[...] = jnp.zeros_like(acc_ref)

    acc = acc_ref[...]
    for dy in range(3):
        for dx in range(3):
            a = x_ref[0, pl.ds(dy, ho), pl.ds(dx, wo), :]       # (ho, wo, tk)
            a = a.reshape(ho * wo, a.shape[-1])
            acc = acc + jnp.dot(a, w_ref[dy, dx],
                                preferred_element_type=jnp.float32)
    acc_ref[...] = acc

    @pl.when(k == pl.num_programs(2) - 1)
    def _():
        out = acc
        if r_ref is not None:
            out = out + r_ref[0].reshape(ho * wo, -1)
        o_ref[0] = out.reshape(ho, wo, -1).astype(o_ref.dtype)


# ---------------------------- kernel wrappers ---------------------------------

def pallas_bn_relu(x_nhwc, gamma, beta):
    """Training-mode BatchNorm2d (batch stats, biased var) + ReLU -> bf16."""
    n, h, w, c = x_nhwc.shape
    m = n * h * w
    x2d = x_nhwc.reshape(m, c).astype(jnp.float32)
    tm = _row_tile(m)
    x2d = _pad_rows(x2d, tm)
    mp = x2d.shape[0]
    grid = (mp // tm,)

    stats = pl.pallas_call(
        _bn_stats_kernel,
        out_shape=jax.ShapeDtypeStruct((2, c), jnp.float32),
        grid=grid,
        in_specs=[pl.BlockSpec((tm, c), lambda i: (i, 0))],
        out_specs=pl.BlockSpec((2, c), lambda i: (0, 0)),
        compiler_params=pltpu.CompilerParams(
            dimension_semantics=("arbitrary",),
            vmem_limit_bytes=_VMEM_LIMIT),
        cost_estimate=pl.CostEstimate(flops=3 * mp * c, transcendentals=0,
                                      bytes_accessed=mp * c * 4 + 2 * c * 4),
    )(x2d)

    # Per-channel scale/shift (tiny C-length vectors) computed in JAX glue.
    mean = stats[0] / m
    var = stats[1] / m - mean * mean            # biased variance (training mode)
    scale = gamma * jax.lax.rsqrt(var + BN_EPS)
    shift = beta - mean * scale

    y = pl.pallas_call(
        _bn_relu_kernel,
        out_shape=jax.ShapeDtypeStruct((mp, c), jnp.bfloat16),
        grid=grid,
        in_specs=[pl.BlockSpec((tm, c), lambda i: (i, 0)),
                  pl.BlockSpec((1, c), lambda i: (0, 0)),
                  pl.BlockSpec((1, c), lambda i: (0, 0))],
        out_specs=pl.BlockSpec((tm, c), lambda i: (i, 0)),
        compiler_params=pltpu.CompilerParams(
            dimension_semantics=("parallel",),
            vmem_limit_bytes=_VMEM_LIMIT),
        cost_estimate=pl.CostEstimate(flops=3 * mp * c, transcendentals=0,
                                      bytes_accessed=mp * c * 4 + mp * c * 2),
    )(x2d, scale.reshape(1, c), shift.reshape(1, c))
    return y[:m].reshape(n, h, w, c)


def pallas_matmul(a_bf16, b_bf16):
    """(M,K)@(K,N) -> f32 with M/N/K tiling and an f32 VMEM accumulator."""
    m, kd = a_bf16.shape
    n = b_bf16.shape[1]
    tm = _row_tile(m)
    a_p = _pad_rows(a_bf16, tm)
    mp = a_p.shape[0]
    tk = _pick_tile(kd, 512)
    tn = _pick_tile(n, 512)
    grid = (mp // tm, n // tn, kd // tk)

    out = pl.pallas_call(
        _matmul_kernel,
        out_shape=jax.ShapeDtypeStruct((mp, n), jnp.float32),
        grid=grid,
        in_specs=[pl.BlockSpec((tm, tk), lambda i, j, k: (i, k)),
                  pl.BlockSpec((tk, tn), lambda i, j, k: (k, j))],
        out_specs=pl.BlockSpec((tm, tn), lambda i, j, k: (i, j)),
        scratch_shapes=[pltpu.VMEM((tm, tn), jnp.float32)],
        compiler_params=pltpu.CompilerParams(
            dimension_semantics=("parallel", "parallel", "arbitrary"),
            vmem_limit_bytes=_VMEM_LIMIT),
        cost_estimate=pl.CostEstimate(
            flops=2 * mp * n * kd, transcendentals=0,
            bytes_accessed=mp * kd * 2 + kd * n * 2 + mp * n * 4),
    )(a_p, b_bf16)
    return out[:m]


def conv3x3_s1(act_bf16, w_bf16, residual=None):
    """3x3 stride-1 conv with the 9 taps fused in-kernel (no HBM im2col)."""
    n, h, w, cin = act_bf16.shape
    cout = w_bf16.shape[-1]
    ho, wo = h, w
    xsp = jnp.pad(act_bf16, ((0, 0), (1, 1), (1, 1), (0, 0)))
    tk = _pick_tile(cin, 512)
    tn = _pick_tile(cout, 512)
    grid = (n, cout // tn, cin // tk)

    in_specs = [pl.BlockSpec((1, h + 2, w + 2, tk), lambda b, j, k: (b, 0, 0, k)),
                pl.BlockSpec((3, 3, tk, tn), lambda b, j, k: (0, 0, k, j))]
    args = [xsp, w_bf16]
    if residual is not None:
        in_specs.append(pl.BlockSpec((1, ho, wo, tn), lambda b, j, k: (b, 0, 0, j)))
        args.append(residual.astype(jnp.float32))

    kern = functools.partial(_conv3x3_s1_kernel, ho=ho, wo=wo,
                             has_residual=residual is not None)
    flops = 2 * n * ho * wo * cin * cout * 9
    bytes_acc = (xsp.size * 2 + w_bf16.size * 2 + n * ho * wo * cout * 4
                 + (n * ho * wo * cout * 4 if residual is not None else 0))

    return pl.pallas_call(
        kern,
        out_shape=jax.ShapeDtypeStruct((n, ho, wo, cout), jnp.float32),
        grid=grid,
        in_specs=in_specs,
        out_specs=pl.BlockSpec((1, ho, wo, tn), lambda b, j, k: (b, 0, 0, j)),
        scratch_shapes=[pltpu.VMEM((ho * wo, tn), jnp.float32)],
        compiler_params=pltpu.CompilerParams(
            dimension_semantics=("parallel", "parallel", "arbitrary"),
            vmem_limit_bytes=_VMEM_LIMIT),
        cost_estimate=pl.CostEstimate(flops=flops, transcendentals=0,
                                      bytes_accessed=bytes_acc),
    )(*args)


def _im2col_3x3(x, stride):
    n, h, w, c = x.shape
    xp = jnp.pad(x, ((0, 0), (1, 1), (1, 1), (0, 0)))
    ho = (h + 2 - 3) // stride + 1
    wo = (w + 2 - 3) // stride + 1
    cols = []
    for dy in range(3):
        for dx in range(3):
            cols.append(xp[:, dy:dy + (ho - 1) * stride + 1:stride,
                           dx:dx + (wo - 1) * stride + 1:stride, :])
    patches = jnp.concatenate(cols, axis=-1)            # (n, ho, wo, 9*c)
    return patches.reshape(n * ho * wo, 9 * c), (n, ho, wo)


def conv3x3(act_bf16, w_bf16, stride, residual=None):
    if stride == 1:
        return conv3x3_s1(act_bf16, w_bf16, residual)
    # TODO(synk): the strided 3x3 conv (one per NetworkBlock) still uses a
    # JAX-level im2col; only stride-1 convs have the taps fused in-kernel.
    assert residual is None
    cin, cout = act_bf16.shape[-1], w_bf16.shape[-1]
    patches, (n, ho, wo) = _im2col_3x3(act_bf16, stride)
    out = pallas_matmul(patches, w_bf16.reshape(9 * cin, cout))
    return out.reshape(n, ho, wo, cout)


def conv1x1(act_bf16, w_bf16, stride):
    xs = act_bf16[:, ::stride, ::stride, :]
    n, ho, wo, cin = xs.shape
    out = pallas_matmul(xs.reshape(n * ho * wo, cin), w_bf16)
    return out.reshape(n, ho, wo, -1)


# ------------------------------ block glue ------------------------------------

def basic_block(x, p):
    """x: (N,H,W,Cin_pad) f32 with padded channels exactly zero."""
    equal = p["equal"]
    act1 = pallas_bn_relu(x, p["bn1_gamma"], p["bn1_beta"])        # bf16
    out = conv3x3(act1, p["conv1_w"], p["stride"])                 # f32
    act2 = pallas_bn_relu(out, p["bn2_gamma"], p["bn2_beta"])      # bf16
    if equal:
        residual = x                                               # f32
    else:
        residual = conv1x1(act1, p["shortcut_w"], p["stride"])     # f32
    return conv3x3(act2, p["conv2_w"], 1, residual=residual)       # f32


def _pad_layer_params(p):
    cin, cout = p["conv1_w"].shape[2], p["conv1_w"].shape[3]
    cin_p, cout_p = _round_up(cin, LANE), _round_up(cout, LANE)

    def pad_w(w, ci, co):
        return jnp.pad(w, ((0, 0), (0, 0), (0, ci - w.shape[2]),
                           (0, co - w.shape[3]))).astype(jnp.bfloat16)

    q = {
        "stride": p["stride"],
        "equal": cin == cout,
        "bn1_gamma": _pad_channels(p["bn1_gamma"], cin_p),
        "bn1_beta": _pad_channels(p["bn1_beta"], cin_p),
        "conv1_w": pad_w(p["conv1_w"], cin_p, cout_p),
        "bn2_gamma": _pad_channels(p["bn2_gamma"], cout_p),
        "bn2_beta": _pad_channels(p["bn2_beta"], cout_p),
        "conv2_w": pad_w(p["conv2_w"], cout_p, cout_p),
    }
    if "shortcut_w" in p:
        q["shortcut_w"] = jnp.pad(
            p["shortcut_w"],
            ((0, cin_p - cin), (0, cout_p - cout))).astype(jnp.bfloat16)
    return q


def network_block(x_nchw, params):
    x = jnp.transpose(x_nchw, (0, 2, 3, 1)).astype(jnp.float32)    # NCHW -> NHWC
    x = _pad_channels(x, _round_up(x.shape[-1], LANE))
    for p in params:
        x = basic_block(x, _pad_layer_params(p))
    out_planes = params[-1]["conv2_w"].shape[-1]
    x = x[..., :out_planes]
    return jnp.transpose(x, (0, 3, 1, 2))                          # NHWC -> NCHW


# --------------------------- parameter init -----------------------------------

def init_network_block_params(key, nb_layers, in_planes, out_planes, stride):
    params = []
    for i in range(nb_layers):
        cin = in_planes if i == 0 else out_planes
        st = stride if i == 0 else 1
        key, k1, k2, k3, kg1, kb1, kg2, kb2 = jax.random.split(key, 8)
        std3 = (2.0 / (3 * 3 * out_planes)) ** 0.5    # kaiming-normal (fan_out)
        p = {
            "bn1_gamma": 1.0 + 0.1 * jax.random.normal(kg1, (cin,), jnp.float32),
            "bn1_beta": 0.1 * jax.random.normal(kb1, (cin,), jnp.float32),
            "conv1_w": std3 * jax.random.normal(k1, (3, 3, cin, out_planes), jnp.float32),
            "bn2_gamma": 1.0 + 0.1 * jax.random.normal(kg2, (out_planes,), jnp.float32),
            "bn2_beta": 0.1 * jax.random.normal(kb2, (out_planes,), jnp.float32),
            "conv2_w": std3 * jax.random.normal(k2, (3, 3, out_planes, out_planes), jnp.float32),
            "stride": st,
        }
        if cin != out_planes:
            std1 = (2.0 / out_planes) ** 0.5
            p["shortcut_w"] = std1 * jax.random.normal(k3, (cin, out_planes), jnp.float32)
        params.append(p)
    return params


# ---------------------------- pure-JAX reference -------------------------------

def _ref_bn_relu(x, gamma, beta):
    mean = jnp.mean(x, axis=(0, 1, 2))
    var = jnp.mean(jnp.square(x - mean), axis=(0, 1, 2))
    return jnp.maximum((x - mean) * jax.lax.rsqrt(var + BN_EPS) * gamma + beta, 0.0)


def _ref_conv(x, w, stride, pad):
    return jax.lax.conv_general_dilated(
        x, w, (stride, stride), ((pad, pad), (pad, pad)),
        dimension_numbers=("NHWC", "HWIO", "NHWC"))


def _ref_basic_block(x, p):
    in_planes = x.shape[-1]
    out_planes = p["conv1_w"].shape[-1]
    equal = (in_planes == out_planes)
    act1 = _ref_bn_relu(x, p["bn1_gamma"], p["bn1_beta"])
    if not equal:
        x = act1
    out = _ref_conv(act1, p["conv1_w"], p["stride"], 1)
    out = _ref_bn_relu(out, p["bn2_gamma"], p["bn2_beta"])
    if equal:
        res = x
    else:
        res = _ref_conv(x, p["shortcut_w"].reshape(1, 1, in_planes, out_planes),
                        p["stride"], 0)
    return res + _ref_conv(out, p["conv2_w"], 1, 1)


def reference(x_nchw, params):
    x = jnp.transpose(x_nchw, (0, 2, 3, 1))
    for p in params:
        x = _ref_basic_block(x, p)
    return jnp.transpose(x, (0, 3, 1, 2))


# --------------------------------- main ----------------------------------------

if __name__ == "__main__":
    key = jax.random.PRNGKey(0)
    kx, kp = jax.random.split(key)
    # NetworkBlock(nb_layers=2, in_planes=4, out_planes=8, block=BasicBlock, stride=2)
    x = jax.random.normal(kx, (2, 4, 16, 16), jnp.float32)   # NCHW, like PyTorch
    params = init_network_block_params(kp, nb_layers=2, in_planes=4,
                                       out_planes=8, stride=2)

    out = jax.block_until_ready(network_block(x, params))
    ref = jax.block_until_ready(reference(x, params))

    assert out.shape == (2, 8, 8, 8), out.shape
    assert jnp.allclose(out, ref, rtol=5e-2, atol=5e-2), \
        float(jnp.max(jnp.abs(out - ref)))
    print("KERNEL_OK")
</pallas_src>

<mosaic_0001>
module attributes {stable_mosaic.version = 11 : i64} {
  func.func @_bn_stats_kernel(%arg0: i32, %arg1: memref<256x128xf32, #tpu.memory_space<vmem>>, %arg2: memref<2x128xf32, #tpu.memory_space<vmem>>) attributes {dimension_semantics = [#tpu.dimension_semantics<arbitrary>], iteration_bounds = array<i64: 2>, scalar_prefetch = 0 : i64, scratch_operands = 0 : i64, tpu.core_type = #tpu.core_type<tc>, window_params = [{transform_indices = @transform_0, window_bounds = array<i64: 256, 128>}, {pipeline_mode = #tpu.pipeline_mode<synchronous>, transform_indices = @transform_1, window_bounds = array<i64: 2, 128>}]} {
    %c0_i32 = arith.constant 0 : i32
    %0 = arith.cmpi eq, %arg0, %c0_i32 : i32
    %1 = arith.extui %0 : i1 to i32
    %c0_i32_0 = arith.constant 0 : i32
    %2 = arith.cmpi ne, %1, %c0_i32_0 : i32
    scf.if %2 {
      %cst_7 = arith.constant 0.000000e+00 : f32
      %13 = vector.broadcast %cst_7 : f32 to vector<2x128xf32>
      %c0_8 = arith.constant 0 : index
      %c0_9 = arith.constant 0 : index
      %14 = vector.load %arg2[%c0_8, %c0_9] : memref<2x128xf32, #tpu.memory_space<vmem>>, vector<2x128xf32>
      tpu.vector_store %arg2[%c0_8, %c0_9], %13 {strides = array<i32>} : memref<2x128xf32, #tpu.memory_space<vmem>>, vector<2x128xf32>,
    } else {
    }
    %c0 = arith.constant 0 : index
    %c0_1 = arith.constant 0 : index
    %3 = vector.load %arg1[%c0, %c0_1] : memref<256x128xf32, #tpu.memory_space<vmem>>, vector<256x128xf32>
    %c0_2 = arith.constant 0 : index
    %c0_3 = arith.constant 0 : index
    %4 = vector.load %arg2[%c0_2, %c0_3] : memref<2x128xf32, #tpu.memory_space<vmem>>, vector<2x128xf32>
    %cst = arith.constant dense<0.000000e+00> : vector<128xf32>
    %5 = vector.multi_reduction <add>, %3, %cst [0] : vector<256x128xf32> to vector<128xf32>
    %6 = vector.shape_cast %5 : vector<128xf32> to vector<1x128xf32>
    %7 = arith.mulf %3, %3 : vector<256x128xf32>
    %cst_4 = arith.constant dense<0.000000e+00> : vector<128xf32>
    %8 = vector.multi_reduction <add>, %7, %cst_4 [0] : vector<256x128xf32> to vector<128xf32>
    %9 = vector.shape_cast %8 : vector<128xf32> to vector<1x128xf32>
    %10 = tpu.concatenate %6, %9 in 0 : vector<1x128xf32>, vector<1x128xf32> -> vector<2x128xf32>
    %11 = arith.addf %4, %10 : vector<2x128xf32>
    %c0_5 = arith.constant 0 : index
    %c0_6 = arith.constant 0 : index
    %12 = vector.load %arg2[%c0_5, %c0_6] : memref<2x128xf32, #tpu.memory_space<vmem>>, vector<2x128xf32>
    tpu.vector_store %arg2[%c0_5, %c0_6], %11 {strides = array<i32>} : memref<2x128xf32, #tpu.memory_space<vmem>>, vector<2x128xf32>,
    return
  }
  func.func @transform_0(%arg0: i32) -> (i32, i32) {
    %c0_i32 = arith.constant 0 : i32
    %c0_i32_0 = arith.constant 0 : i32
    return %arg0, %c0_i32 : i32, i32
  }
  func.func @transform_1(%arg0: i32) -> (i32, i32) {
    %c0_i32 = arith.constant 0 : i32
    %c0_i32_0 = arith.constant 0 : i32
    %c0_i32_1 = arith.constant 0 : i32
    return %c0_i32, %c0_i32_0 : i32, i32
  }
}

</mosaic_0001>

<llo_original>
// kernel: tpu_custom_call.1
$region0: #{tpu_custom_call.1}
  #allocation0 [shape = 'u32[]', space=smem, size = 0x4, offset = 0x4, fixed_abs, tag = 'smem constant byte address 0x4 - core index']
  #allocation1 [shape = 'u32[72,128]{1,0:T(1,128)}', space=vmem, size = 0x9000, scoped, tag = 'internal scratch']
  %s0 = inlined_call_operand.hbm [shape: f32[512,128], index: 0, kind: input, shape index: {}]
  %s1 = inlined_call_operand.hbm [shape: f32[2,128], index: 1, kind: output, shape index: {}]
  %s2 = sld [smem:[#allocation0]]
  $region45: #{tpu_custom_call.1} parent=0
    _
  %s4 = ssub.s32 1, %s2
  %s5 = scalar_select 0, %s4, %s2
  $region1: #{tpu_custom_call.1} parent=0
    #allocation2 [shape = 'u8[262144]{0}', space=vmem, size = 0x40000, scoped, tag = 'input window, operand 0']
    #allocation3 [shape = 's32[2]{0}', space=sflag, size = 0x8, scoped, tag = 'scoped memory for tpu_custom_call.1']
    #allocation4 [shape = 's32[2]{0}', space=sflag, size = 0x8, scoped, tag = 'scoped memory for tpu_custom_call.1']
    #allocation5 [shape = 'u8[1024]{0}', space=vmem, size = 0x400, scoped, tag = 'output window, operand 0, single buffered']
    %6 = vsyncpa [#allocation3], 0
    %s7 = scalar_lea.sflag [#allocation3], 1
    %8 = vsyncpa %s7, 0
    %9 = vsyncpa [#allocation4], 0
    loop: start=0, step=1, limit=4
    $region2: #{tpu_custom_call.1} parent=1 // loop_pre_header
      _
    $region3: #{tpu_custom_call.1} parent=1 // loop_header
      %s11 = sphi 0, %s15
      %p12 = scmp.ge.s32.totalorder %s11, 4
      %s21 = sphi 0, %s23
      %s24 = sphi 0, %s21
      %s25 = sphi 0, %s24
      %s41 = sphi 0, %s25
      %s45 = sphi 0, %s45
      %s47 = sphi 0, %s45
      %s48 = sphi 0, %s47
      %s62 = sphi 0, %s48
    $region4: #{tpu_custom_call.1} parent=1 // loop_header_branch
      %14 = sbr.rel (%p12) target = $region8
    $region5: #{tpu_custom_call.1} parent=1 // loop_body
      %s16 = ssub.s32 %s11, 1
      %s17 = ssub.s32 %s11, 2
      %s18 = sadd.s32 %s11, 1
      %s19 = ssub.s32 %s11, %s18
      %p20 = scmp.eq.s32.totalorder %s19, 0
      %s22 = sadd.s32 %s21, 1
      %s23 = scalar_select %p20, %s21, %s22
      %p26 = pneg %p20
      %p27 = scmp.eq.s32.totalorder %s11, 1
      %p28 = por %p26, %p27
      %p29 = scmp.ne.s32.totalorder %s21, %s24
      %p30 = scmp.eq.s32.totalorder %s11, 0
      %p31 = por %p29, %p30
      %p32 = scmp.ne.s32.totalorder %s21, %s24
      %p33 = scmp.eq.s32.totalorder %s16, 1
      %p34 = por %p32, %p33
      %p35 = scmp.ne.s32.totalorder %s24, %s25
      %p36 = scmp.eq.s32.totalorder %s16, 0
      %p37 = por %p35, %p36
      %p38 = scmp.ne.s32.totalorder %s24, %s25
      %p39 = scmp.eq.s32.totalorder %s17, 1
      %p40 = por %p38, %p39
      %p42 = scmp.ne.s32.totalorder %s25, %s41
      %p43 = scmp.eq.s32.totalorder %s17, 0
      %p44 = por %p42, %p43
      %s46 = sadd.s32 %s45, 1
      %p49 = scmp.eq.s32.totalorder %s11, 1
      %p50 = scmp.ne.s32.totalorder %s45, %s47
      %p51 = scmp.eq.s32.totalorder %s11, 0
      %p52 = por %p50, %p51
      %p53 = scmp.ne.s32.totalorder %s45, %s47
      %p54 = scmp.eq.s32.totalorder %s16, 1
      %p55 = por %p53, %p54
      %p56 = scmp.ne.s32.totalorder %s47, %s48
      %p57 = scmp.eq.s32.totalorder %s16, 0
      %p58 = por %p56, %p57
      %p59 = scmp.ne.s32.totalorder %s47, %s48
      %p60 = scmp.eq.s32.totalorder %s17, 1
      %p61 = por %p59, %p60
      %p63 = scmp.ne.s32.totalorder %s48, %s62
      %p64 = scmp.eq.s32.totalorder %s17, 0
      %p65 = por %p63, %p64
      %p66 = scmp.le.s32.totalorder 1, %s11
      %p67 = scmp.lt.s32.totalorder %s11, 3
      %p68 = pnand %p66, %p67
      %p69 = pneg %p68
      // Predicated region
      $region9: #{tpu_custom_call.1} parent=5 // pred_check
        _
      $region10: #{tpu_custom_call.1} parent=5 // pred_check_branch
        %71 = sbr.rel (%p68) target = $region12
      $region11: #{tpu_custom_call.1} parent=5 // pred_region
        %s72 = ssub.s32 %s11, 1
      $region12: #{tpu_custom_call.1} parent=5 // pred_fallthru
        _
      %p73 = scmp.lt.s32.totalorder %s11, 2
      // Predicated region
      $region13: #{tpu_custom_call.1} parent=5 // pred_check
        %p74 = pneg %p73
      $region14: #{tpu_custom_call.1} parent=5 // pred_check_branch
        %76 = sbr.rel (%p74) target = $region16
      $region15: #{tpu_custom_call.1} parent=5 // pred_region
        // Predicated region
        $region17: #{tpu_custom_call.1} parent=15 // pred_check
          %p77 = pneg %p31
        $region18: #{tpu_custom_call.1} parent=15 // pred_check_branch
          %79 = sbr.rel (%p77) target = $region20
        $region19: #{tpu_custom_call.1} parent=15 // pred_region
          %s80 = sand.u32 %s21, 1
          %s81 = scalar_lea.sflag [#allocation3], %s80
          %s82 = sand.u32 %s21, 1
          %s83 = smul.addr %s82, 256
          %s84 = scalar_lea.vmem [#allocation2], %s83
          %s85 = smul.u32 32, %s11
          %87 = vsyncadd %s81, 0
          %s88 = smul.addr %s85, 8
          %s89 = scalar_lea.hbm %s0, %s88
          %s90 = sshll.u32 %s89, 4
          %s91 = int_to_ptr.hbm [resolvable:$true] %s90
          %s92 = sshll.u32 %s84, 4
          %s93 = int_to_ptr.vmem [resolvable:$true] %s92
          %98 = dma.hbm_to_vmem [thread:$0]  %s91, 4096, %s93, %s81, 128, 128, 8
        $region20: #{tpu_custom_call.1} parent=15 // pred_fallthru
          _
      $region16: #{tpu_custom_call.1} parent=5 // pred_fallthru
        _
      %p99 = scmp.le.s32.totalorder 1, %s11
      %p100 = scmp.lt.s32.totalorder %s11, 3
      %p101 = pnand %p99, %p100
      %p102 = pneg %p101
      // Predicated region
      $region21: #{tpu_custom_call.1} parent=5 // pred_check
        _
      $region22: #{tpu_custom_call.1} parent=5 // pred_check_branch
        %104 = sbr.rel (%p101) target = $region24
      $region23: #{tpu_custom_call.1} parent=5 // pred_region
        %s105 = ssub.s32 %s11, 1
        %s106 = sand.u32 %s24, 1
        %s107 = scalar_lea.sflag [#allocation3], %s106
        %s108 = sand.u32 %s24, 1
        %s109 = smul.addr %s108, 256
        %s110 = scalar_lea.vmem [#allocation2], %s109
        // Predicated region
        $region25: #{tpu_custom_call.1} parent=23 // pred_check
          %p111 = pneg %p37
        $region26: #{tpu_custom_call.1} parent=23 // pred_check_branch
          %113 = sbr.rel (%p111) target = $region28
        $region27: #{tpu_custom_call.1} parent=23 // pred_region
          %115 = dma.done %s107, 4096
        $region28: #{tpu_custom_call.1} parent=23 // pred_fallthru
          _
        %s116 = sand.u32 %s24, 1
        %s117 = scalar_lea.sflag [#allocation3], %s116
        %s118 = sand.u32 %s24, 1
        %s119 = smul.addr %s118, 256
        %s120 = scalar_lea.vmem [#allocation2], %s119
        %p121 = pneg %p37
        %p122 = pneg %p34
        %p123 = pneg %p58
        %p124 = pneg %p55
        %s125 = smul.u32 32, %s16
        %p126 = scmp.eq.s32.totalorder %s16, 0
        // Predicated region
        $region29: #{tpu_custom_call.1} parent=23 // pred_check
          %p127 = pneg %p126
        $region30: #{tpu_custom_call.1} parent=23 // pred_check_branch
          %129 = sbr.rel (%p127) target = $region32
        $region31: #{tpu_custom_call.1} parent=23 // pred_region
          %130 = vst [vmem:[#allocation5] sm:$0x3] 0.0
        $region32: #{tpu_custom_call.1} parent=23 // pred_fallthru
          _
        %v131 = vld [vmem:[%s110] sm:$0xff]
        %v132 = vld [vmem:[%s110 + $0x8] sm:$0xff]
        %v133 = vld [vmem:[%s110 + $0x10] sm:$0xff]
        %v134 = vld [vmem:[%s110 + $0x18] sm:$0xff]
        %v135 = vld [vmem:[%s110 + $0x20] sm:$0xff]
        %v136 = vld [vmem:[%s110 + $0x28] sm:$0xff]
        %v137 = vld [vmem:[%s110 + $0x30] sm:$0xff]
        %v138 = vld [vmem:[%s110 + $0x38] sm:$0xff]
        %v139 = vld [vmem:[%s110 + $0x40] sm:$0xff]
        %v140 = vld [vmem:[%s110 + $0x48] sm:$0xff]
        %v141 = vld [vmem:[%s110 + $0x50] sm:$0xff]
        %v142 = vld [vmem:[%s110 + $0x58] sm:$0xff]
        %v143 = vld [vmem:[%s110 + $0x60] sm:$0xff]
        %v144 = vld [vmem:[%s110 + $0x68] sm:$0xff]
        %v145 = vld [vmem:[%s110 + $0x70] sm:$0xff]
        %v146 = vld [vmem:[%s110 + $0x78] sm:$0xff]
        %v147 = vld [vmem:[%s110 + $0x80] sm:$0xff]
        %v148 = vld [vmem:[%s110 + $0x88] sm:$0xff]
        %v149 = vld [vmem:[%s110 + $0x90] sm:$0xff]
        %v150 = vld [vmem:[%s110 + $0x98] sm:$0xff]
        %v151 = vld [vmem:[%s110 + $0xa0] sm:$0xff]
        %v152 = vld [vmem:[%s110 + $0xa8] sm:$0xff]
        %v153 = vld [vmem:[%s110 + $0xb0] sm:$0xff]
        %v154 = vld [vmem:[%s110 + $0xb8] sm:$0xff]
        %v155 = vld [vmem:[%s110 + $0xc0] sm:$0xff]
        %v156 = vld [vmem:[%s110 + $0xc8] sm:$0xff]
        %v157 = vld [vmem:[%s110 + $0xd0] sm:$0xff]
        %v158 = vld [vmem:[%s110 + $0xd8] sm:$0xff]
        %v159 = vld [vmem:[%s110 + $0xe0] sm:$0xff]
        %v160 = vld [vmem:[%s110 + $0xe8] sm:$0xff]
        %v161 = vld [vmem:[%s110 + $0xf0] sm:$0xff]
        %v162 = vld [vmem:[%s110 + $0xf8] sm:$0xff]
        %v163 = vld [vmem:[#allocation5] sm:$0x3]
        %v164 = vadd.f32 %v131, %v132
        %v165 = vadd.f32 %v164, %v133
        %v166 = vadd.f32 %v165, %v134
        %v167 = vadd.f32 %v166, %v135
        %v168 = vadd.f32 %v167, %v136
        %v169 = vadd.f32 %v168, %v137
        %v170 = vadd.f32 %v169, %v138
        %v171 = vadd.f32 %v170, %v139
        %v172 = vadd.f32 %v171, %v140
        %v173 = vadd.f32 %v172, %v141
        %v174 = vadd.f32 %v173, %v142
        %v175 = vadd.f32 %v174, %v143
        %v176 = vadd.f32 %v175, %v144
        %v177 = vadd.f32 %v176, %v145
        %v178 = vadd.f32 %v177, %v146
        %v179 = vadd.f32 %v178, %v147
        %v180 = vadd.f32 %v179, %v148
        %v181 = vadd.f32 %v180, %v149
        %v182 = vadd.f32 %v181, %v150
        %v183 = vadd.f32 %v182, %v151
        %v184 = vadd.f32 %v183, %v152
        %v185 = vadd.f32 %v184, %v153
        %v186 = vadd.f32 %v185, %v154
        %v187 = vadd.f32 %v186, %v155
        %v188 = vadd.f32 %v187, %v156
        %v189 = vadd.f32 %v188, %v157
        %v190 = vadd.f32 %v189, %v158
        %v191 = vadd.f32 %v190, %v159
        %v192 = vadd.f32 %v191, %v160
        %v193 = vadd.f32 %v192, %v161
        %v194 = vadd.f32 %v193, %v162
        %v195 = vrot.slane %v194, 4
        %v196 = vadd.f32 %v194, %v195
        %v197 = vrot.slane %v196, 2
        %v198 = vadd.f32 %v196, %v197
        %v199 = vrot.slane %v198, 1
        %v200 = vadd.f32 %v198, %v199
        %v201 = vmul.f32 %v131, %v131
        %v202 = vmul.f32 %v132, %v132
        %v203 = vmul.f32 %v133, %v133
        %v204 = vmul.f32 %v134, %v134
        %v205 = vmul.f32 %v135, %v135
        %v206 = vmul.f32 %v136, %v136
        %v207 = vmul.f32 %v137, %v137
        %v208 = vmul.f32 %v138, %v138
        %v209 = vmul.f32 %v139, %v139
        %v210 = vmul.f32 %v140, %v140
        %v211 = vmul.f32 %v141, %v141
        %v212 = vmul.f32 %v142, %v142
        %v213 = vmul.f32 %v143, %v143
        %v214 = vmul.f32 %v144, %v144
        %v215 = vmul.f32 %v145, %v145
        %v216 = vmul.f32 %v146, %v146
        %v217 = vmul.f32 %v147, %v147
        %v218 = vmul.f32 %v148, %v148
        %v219 = vmul.f32 %v149, %v149
        %v220 = vmul.f32 %v150, %v150
        %v221 = vmul.f32 %v151, %v151
        %v222 = vmul.f32 %v152, %v152
        %v223 = vmul.f32 %v153, %v153
        %v224 = vmul.f32 %v154, %v154
        %v225 = vmul.f32 %v155, %v155
        %v226 = vmul.f32 %v156, %v156
        %v227 = vmul.f32 %v157, %v157
        %v228 = vmul.f32 %v158, %v158
        %v229 = vmul.f32 %v159, %v159
        %v230 = vmul.f32 %v160, %v160
        %v231 = vmul.f32 %v161, %v161
        %v232 = vmul.f32 %v162, %v162
        %v233 = vadd.f32 %v201, %v202
        %v234 = vadd.f32 %v233, %v203
        %v235 = vadd.f32 %v234, %v204
        %v236 = vadd.f32 %v235, %v205
        %v237 = vadd.f32 %v236, %v206
        %v238 = vadd.f32 %v237, %v207
        %v239 = vadd.f32 %v238, %v208
        %v240 = vadd.f32 %v239, %v209
        %v241 = vadd.f32 %v240, %v210
        %v242 = vadd.f32 %v241, %v211
        %v243 = vadd.f32 %v242, %v212
        %v244 = vadd.f32 %v243, %v213
        %v245 = vadd.f32 %v244, %v214
        %v246 = vadd.f32 %v245, %v215
        %v247 = vadd.f32 %v246, %v216
        %v248 = vadd.f32 %v247, %v217
        %v249 = vadd.f32 %v248, %v218
        %v250 = vadd.f32 %v249, %v219
        %v251 = vadd.f32 %v250, %v220
        %v252 = vadd.f32 %v251, %v221
        %v253 = vadd.f32 %v252, %v222
        %v254 = vadd.f32 %v253, %v223
        %v255 = vadd.f32 %v254, %v224
        %v256 = vadd.f32 %v255, %v225
        %v257 = vadd.f32 %v256, %v226
        %v258 = vadd.f32 %v257, %v227
        %v259 = vadd.f32 %v258, %v228
        %v260 = vadd.f32 %v259, %v229
        %v261 = vadd.f32 %v260, %v230
        %v262 = vadd.f32 %v261, %v231
        %v263 = vadd.f32 %v262, %v232
        %v264 = vrot.slane %v263, 4
        %v265 = vadd.f32 %v263, %v264
        %v266 = vrot.slane %v265, 2
        %v267 = vadd.f32 %v265, %v266
        %v268 = vrot.slane %v267, 1
        %v269 = vadd.f32 %v267, %v268
        %vm270 = vcmask 1040384
        %v271 = vsel %vm270, %v200, %v269
        %v272 = vadd.f32 %v163, %v271
        %273 = vst [vmem:[#allocation5] sm:$0x3] %v272
        // Predicated region
        $region33: #{tpu_custom_call.1} parent=23 // pred_check
          %p274 = pneg %p55
        $region34: #{tpu_custom_call.1} parent=23 // pred_check_branch
          %276 = sbr.rel (%p274) target = $region36
        $region35: #{tpu_custom_call.1} parent=23 // pred_region
          %278 = vsyncadd [#allocation4], 0
          %s280 = sshll.u32 [#allocation5], 4
          %s281 = int_to_ptr.vmem [resolvable:$true] %s280
          %s282 = sshll.u32 %s1, 4
          %s283 = int_to_ptr.hbm [resolvable:$true] %s282
          %285 = dma.vmem_to_hbm [thread:$0]  %s281, 32, %s283, [#allocation4]
        $region36: #{tpu_custom_call.1} parent=23 // pred_fallthru
          _
        // Predicated region
        $region37: #{tpu_custom_call.1} parent=23 // pred_check
          %p286 = pneg %p55
        $region38: #{tpu_custom_call.1} parent=23 // pred_check_branch
          %288 = sbr.rel (%p286) target = $region40
        $region39: #{tpu_custom_call.1} parent=23 // pred_region
          %290 = dma.done [#allocation4], 32
        $region40: #{tpu_custom_call.1} parent=23 // pred_fallthru
          _
      $region24: #{tpu_custom_call.1} parent=5 // pred_fallthru
        _
      %p291 = scmp.le.s32.totalorder 2, %s11
      // Predicated region
      $region41: #{tpu_custom_call.1} parent=5 // pred_check
        %p292 = pneg %p291
      $region42: #{tpu_custom_call.1} parent=5 // pred_check_branch
        %294 = sbr.rel (%p292) target = $region44
      $region43: #{tpu_custom_call.1} parent=5 // pred_region
        %s295 = ssub.s32 %s11, 2
      $region44: #{tpu_custom_call.1} parent=5 // pred_fallthru
        _
    $region6: #{tpu_custom_call.1} parent=1 // loop_footer
      %s15 = sadd.s32 1, %s11
    $region7: #{tpu_custom_call.1} parent=1 // loop_footer_branch
      %10 = sbr.rel target = $region3
    $region8: #{tpu_custom_call.1} parent=1 // loop_exit
      _
    %296 = vsyncpa [#allocation3], 1
    %s297 = scalar_lea.sflag [#allocation3], 1
    %298 = vsyncpa %s297, 1
    %299 = vsyncpa [#allocation4], 1
    %s300 = scalar_lea.sflag [#allocation4], 1
    %301 = vsyncpa %s300, 1

</llo_original>
